<compile_context>
chip_gen: v7x
topology: tpu7x:2x2x1
jax: 0.10.0
libtpu: 0.0.40
codegen_flags: <defaults>
</compile_context>

<pallas_src>
import functools

import jax
import jax.numpy as jnp
from jax.experimental import pallas as pl
from jax.experimental.pallas import tpu as pltpu


_GIOU_EPS = 1e-9


# ----------------------------------------------------------------------------- shared helper

def _giou(px0, py0, px1, py1, tx0, ty0, tx1, ty1):
    """Generalized IoU on broadcastable per-coordinate tensors (traced inside kernels).

    Denominators are eps-clamped so degenerate (zero-area / zero-enclosure) boxes yield a finite
    value instead of 0/0 -> NaN (which would silently corrupt the Hungarian matching)."""
    area1 = (px1 - px0) * (py1 - py0)
    area2 = (tx1 - tx0) * (ty1 - ty0)
    lt_x = jnp.maximum(px0, tx0)
    lt_y = jnp.maximum(py0, ty0)
    rb_x = jnp.minimum(px1, tx1)
    rb_y = jnp.minimum(py1, ty1)
    wh_x = jnp.maximum(rb_x - lt_x, 0.0)
    wh_y = jnp.maximum(rb_y - lt_y, 0.0)
    inter = wh_x * wh_y
    union = area1 + area2 - inter
    iou = inter / jnp.maximum(union, _GIOU_EPS)
    elt_x = jnp.minimum(px0, tx0)
    elt_y = jnp.minimum(py0, ty0)
    erb_x = jnp.maximum(px1, tx1)
    erb_y = jnp.maximum(py1, ty1)
    ewh_x = jnp.maximum(erb_x - elt_x, 0.0)
    ewh_y = jnp.maximum(erb_y - elt_y, 0.0)
    earea = ewh_x * ewh_y
    return iou - (earea - union) / jnp.maximum(earea, _GIOU_EPS)


def _round_up(x, m):
    return ((x + m - 1) // m) * m


# ----------------------------------------------------------------------------- kernel A: matcher cost matrix

def _make_cost_kernel(n_queries, n_classes, t_pad):
    def kernel(probs_ref, labels_ref, pbox_ref, tbox_t_ref, c_ref):
        # probs: [Q, C], labels: [1, Tp] (float, -1 padding), pbox: [Q, 4], tbox_t: [4, Tp]
        logits = probs_ref[...]
        m = jnp.max(logits, axis=-1, keepdims=True)
        e = jnp.exp(logits - m)
        sm = e / jnp.sum(e, axis=-1, keepdims=True)                 # softmax(-1), like the matcher

        # one-hot of target labels built in-kernel; bf16 operands -> MXU-native pass with f32
        # accumulation (one-hot exact in bf16; near-tie costs could flip an assignment vs. the
        # f32 reference — acceptable for an argmin-based matcher, documented here).
        lab = labels_ref[...]                                       # [1, Tp]
        cls_iota = jax.lax.broadcasted_iota(jnp.int32, (n_classes, t_pad), 0).astype(jnp.float32)
        onehot_ct = (cls_iota == lab).astype(jnp.bfloat16)          # [C, Tp]; padded cols all-zero
        cost_class = -jnp.dot(sm.astype(jnp.bfloat16), onehot_ct,
                              preferred_element_type=jnp.float32)   # [Q, Tp]

        pb = pbox_ref[...]
        tb = tbox_t_ref[...]
        px0, py0, px1, py1 = pb[:, 0:1], pb[:, 1:2], pb[:, 2:3], pb[:, 3:4]
        tx0, ty0, tx1, ty1 = tb[0:1, :], tb[1:2, :], tb[2:3, :], tb[3:4, :]

        cost_bbox = (jnp.abs(px0 - tx0) + jnp.abs(py0 - ty0) +
                     jnp.abs(px1 - tx1) + jnp.abs(py1 - ty1))       # L1 cdist [Q, Tp]
        cost_giou = -_giou(px0, py0, px1, py1, tx0, ty0, tx1, ty1)  # [Q, Tp]

        # HungarianMatcher defaults: cost_bbox = cost_class = cost_giou = 1
        c_ref[...] = cost_bbox + cost_class + cost_giou
    return kernel


# ----------------------------------------------------------------------------- kernel B: fused losses

def _make_fused_loss_kernel(n_classes, n_matched, num_boxes, n_queries, t_pad):
    inv_m = 1.0 / float(max(n_matched, 1))      # guard M == 0 (no matched queries)
    inv_c = 1.0 / float(n_classes)
    inv_b = 1.0 / float(max(num_boxes, 1))      # guard num_boxes == 0

    def kernel(probs_ref, scales_ref, pbox_ref, tbox_t_ref, labels_ref, qoft_ref, out_ref):
        p = probs_ref[...]                       # [Q, C]  matched/unmatched query probabilities
        w = scales_ref[...]                      # [1, C]  BCE class weights ("scales")
        pb = pbox_ref[...]                       # [Q, 4]
        tb = tbox_t_ref[...]                     # [4, Tp]
        lab = labels_ref[...]                    # [1, Tp] float labels, -1 padding
        qoft = qoft_ref[...]                     # [1, Tp] int32: query matched to each target, -1 pad

        # --- assignment matrix A[q, t] = 1 iff query q is matched to target t ---
        row_iota = jax.lax.broadcasted_iota(jnp.int32, (n_queries, t_pad), 0)
        A = (row_iota == qoft).astype(jnp.float32)                  # [Q, Tp]
        matched = jnp.sum(A, axis=1, keepdims=True)                 # [Q, 1] in {0, 1}
        qlab = jnp.sum(A * lab, axis=1, keepdims=True)              # [Q, 1] label of matched target

        # --- gather each query's matched target box: 4 masked lane-reductions instead of the
        #     full pairwise [Q, Tp] L1 / GIoU maps (~Tp-fold less VPU work, no big temporaries) ---
        tqx0 = jnp.sum(A * tb[0:1, :], axis=1, keepdims=True)       # [Q, 1]
        tqy0 = jnp.sum(A * tb[1:2, :], axis=1, keepdims=True)
        tqx1 = jnp.sum(A * tb[2:3, :], axis=1, keepdims=True)
        tqy1 = jnp.sum(A * tb[3:4, :], axis=1, keepdims=True)

        px0, py0, px1, py1 = pb[:, 0:1], pb[:, 1:2], pb[:, 2:3], pb[:, 3:4]   # [Q, 1]

        l1 = (jnp.abs(px0 - tqx0) + jnp.abs(py0 - tqy0) +
              jnp.abs(px1 - tqx1) + jnp.abs(py1 - tqy1)) * matched            # [Q, 1]
        loss_bbox = jnp.sum(l1, axis=0, keepdims=True) * inv_b                # (1, 1)

        giou = _giou(px0, py0, px1, py1, tqx0, tqy0, tqx1, tqy1)              # [Q, 1]
        loss_giou = jnp.sum((1.0 - giou) * matched, axis=0, keepdims=True) * inv_b

        # --- class (push / pull) loss: BCELoss(weight=scales) + focal-style modulation ---
        # Only two full-size [Q, C] EUP passes (log(1-p), exp); the positive-class term is
        # computed on the gathered matched-class [Q, 1] column and patched into the row sum.
        log_1mp = jnp.maximum(jnp.log(1.0 - p), -100.0)             # PyTorch BCELoss clamps at -100
        neg_bce = -w * log_1mp                                      # BCE against all-zero targets
        neg_focal = jnp.square(1.0 - jnp.exp(-neg_bce)) * neg_bce   # [Q, C]
        row_neg = jnp.sum(neg_focal, axis=1, keepdims=True)         # [Q, 1]

        loss_bg = jnp.sum(row_neg * (1.0 - matched), axis=0, keepdims=True) * inv_c

        cls_iota = jax.lax.broadcasted_iota(jnp.int32, (n_queries, n_classes), 1).astype(jnp.float32)
        t_onehot = (cls_iota == qlab).astype(jnp.float32) * matched  # [Q, C]; zero rows if unmatched

        p_at = jnp.sum(t_onehot * p, axis=1, keepdims=True)          # [Q, 1] prob at matched class
        w_at = jnp.sum(t_onehot * w, axis=1, keepdims=True)          # [Q, 1] weight at matched class
        neg_at = jnp.sum(t_onehot * neg_focal, axis=1, keepdims=True)  # [Q, 1]

        log_p_at = jnp.maximum(jnp.log(p_at), -100.0)                # tiny [Q, 1] EUP pass
        pos_bce_at = -w_at * log_p_at
        pos_focal_at = jnp.square(1.0 - jnp.exp(-pos_bce_at)) * pos_bce_at * 10.0  # x10 at target==1

        # matched-row class sum = (all-classes background focal) - (target-class background focal)
        #                         + (target-class positive focal x10)
        row_pos = row_neg - neg_at + pos_focal_at                    # [Q, 1]
        loss_ce = jnp.sum(row_pos * matched, axis=0, keepdims=True) * inv_m

        # pack the four scalars into one lane-dense (1, 128) store via a single nested select
        lane = jax.lax.broadcasted_iota(jnp.int32, (1, 128), 1)
        out_ref[...] = jnp.where(lane == 0, loss_ce,
                       jnp.where(lane == 1, loss_bg,
                       jnp.where(lane == 2, loss_bbox,
                       jnp.where(lane == 3, loss_giou,
                                 jnp.zeros((1, 128), jnp.float32)))))
    return kernel


# ----------------------------------------------------------------------------- on-device exact assignment

# TODO(synk): the augmenting-path LSA is a data-dependent sequential search; an in-kernel
# version (cost matrix in VMEM, u/v/p/minv/way in SMEM scratch) would also remove the cost
# matrix HBM roundtrip, but the required dynamic scalar scatters lower fragilely in Mosaic,
# so it stays as plain JAX (lax.while_loop / fori_loop) fully on-device under the same jit.
def _hungarian_q_of_t(cost_qt, n_t):
    """Exact linear-sum-assignment (Jonker-Volgenant / e-maxx Hungarian with potentials).

    cost_qt: [Q, Tp] float32 cost matrix; only the first n_t target columns are valid, n_t <= Q.
    Returns q_of_t: int32[n_t], the query assigned to each target (globally optimal).
    """
    q = cost_qt.shape[0]
    a = cost_qt.T.astype(jnp.float32)            # [Tp, Q]; algorithm rows = targets, cols = queries
    m = q
    inf = jnp.float32(1e30)

    u0 = jnp.zeros((n_t,), jnp.float32)          # row (target) potentials
    v0 = jnp.zeros((m + 1,), jnp.float32)        # col (query) potentials, index m = virtual column
    p0 = jnp.full((m + 1,), -1, jnp.int32)       # p[j] = target assigned to query j

    def assign_one(i, carry):
        u, v, p = carry
        p = p.at[m].set(i)                       # the virtual column "holds" the new row i

        minv0 = jnp.full((m + 1,), inf, jnp.float32)
        way0 = jnp.full((m + 1,), m, jnp.int32)
        used0 = jnp.zeros((m + 1,), jnp.bool_)
        in_tree0 = jnp.zeros((n_t,), jnp.bool_)  # rows currently on the alternating tree
        j0_init = jnp.array(m, jnp.int32)

        def search_cond(st):
            _, _, p_, _, _, _, _, j0 = st
            return p_[j0] != -1

        def search_body(st):
            u_, v_, p_, minv, way, used, in_tree, j0 = st
            used = used.at[j0].set(True)
            i0 = p_[j0]
            # incremental tree membership: O(1) update instead of the O(n_t*m) rescan
            # `any(used & (p == arange(n_t)[:,None]))` every iteration.
            in_tree = in_tree.at[i0].set(True)
            cur = jnp.concatenate([a[i0, :] - u_[i0] - v_[:m],
                                   jnp.full((1,), inf, jnp.float32)])
            upd = jnp.logical_and(jnp.logical_not(used), cur < minv)
            minv = jnp.where(upd, cur, minv)
            way = jnp.where(upd, j0, way)
            masked = jnp.where(used, inf, minv)
            j1 = jnp.argmin(masked).astype(jnp.int32)
            delta = masked[j1]
            u_ = u_ + jnp.where(in_tree, delta, 0.0)
            v_ = jnp.where(used, v_ - delta, v_)
            minv = jnp.where(used, minv, minv - delta)
            return (u_, v_, p_, minv, way, used, in_tree, j1)

        u, v, p, _, way, _, _, j0 = jax.lax.while_loop(
            search_cond, search_body,
            (u, v, p, minv0, way0, used0, in_tree0, j0_init))

        # augment along the alternating path back to the virtual column
        def aug_cond(st):
            j0_, _ = st
            return j0_ != m

        def aug_body(st):
            j0_, p_ = st
            j1 = way[j0_]
            p_ = p_.at[j0_].set(p_[j1])
            return (j1, p_)

        _, p = jax.lax.while_loop(aug_cond, aug_body, (j0, p))
        return (u, v, p)

    _, _, p = jax.lax.fori_loop(0, n_t, assign_one, (u0, v0, p0))
    targets = jnp.arange(n_t, dtype=jnp.int32)[:, None]     # [n_t, 1]
    q_of_t = jnp.argmax(p[None, :m] == targets, axis=1).astype(jnp.int32)
    return q_of_t


# ----------------------------------------------------------------------------- jitted full forward

@functools.partial(jax.jit, static_argnames=("n_classes",))
def _push_pull_loss_jit(predicted_classes, predicted_boxes, labels, tboxes, scales, *, n_classes):
    bs, nq, c = predicted_classes.shape
    n_targets = int(labels.shape[0])                               # static at trace time
    t_pad = max(128, _round_up(max(n_targets, 1), 128))            # lane-dense target axis

    # all padding / transpose / dtype prep fused under this single jit (no extra dispatches)
    probs2d = predicted_classes.reshape(nq, c).astype(jnp.float32)
    pbox2d = predicted_boxes.reshape(nq, 4).astype(jnp.float32)
    scales_row = scales.reshape(1, n_classes).astype(jnp.float32)

    labels_f = jnp.full((1, t_pad), -1.0, jnp.float32)
    # padded target columns hold a valid dummy box (0,0,1,1) so GIoU stays finite everywhere
    tbox_t_pad = jnp.concatenate([jnp.zeros((2, t_pad), jnp.float32),
                                  jnp.ones((2, t_pad), jnp.float32)], axis=0)
    if n_targets:
        labels_f = labels_f.at[0, :n_targets].set(labels.astype(jnp.float32))
        tbox_t_pad = tbox_t_pad.at[:, :n_targets].set(tboxes.T.astype(jnp.float32))

    if n_targets > 0:
        cmat = pl.pallas_call(
            _make_cost_kernel(nq, c, t_pad),
            out_shape=jax.ShapeDtypeStruct((nq, t_pad), jnp.float32),
            in_specs=[pl.BlockSpec(memory_space=pltpu.MemorySpace.VMEM)] * 4,
            out_specs=pl.BlockSpec(memory_space=pltpu.MemorySpace.VMEM),
        )(probs2d, labels_f, pbox2d, tbox_t_pad)
        q_of_t = _hungarian_q_of_t(cmat, n_targets)                # on-device, exact
        qoft_row = jnp.full((1, t_pad), -1, jnp.int32).at[0, :n_targets].set(q_of_t)
    else:
        # no targets: every query is background, matched losses are defined as 0
        qoft_row = jnp.full((1, t_pad), -1, jnp.int32)

    packed = pl.pallas_call(
        _make_fused_loss_kernel(n_classes, n_targets, n_targets, nq, t_pad),
        out_shape=jax.ShapeDtypeStruct((1, 128), jnp.float32),
        in_specs=[pl.BlockSpec(memory_space=pltpu.MemorySpace.VMEM)] * 6,
        out_specs=pl.BlockSpec(memory_space=pltpu.MemorySpace.VMEM),
    )(probs2d, scales_row, pbox2d, tbox_t_pad, labels_f, qoft_row)

    return {"loss_ce": packed[0, 0], "loss_bg": packed[0, 1],
            "loss_bbox": packed[0, 2], "loss_giou": packed[0, 3]}


def push_pull_loss(predicted_classes, target_classes, predicted_boxes, target_boxes,
                   scales, n_classes):
    bs, num_queries, c = predicted_classes.shape
    assert bs == 1, "reference class_loss asserts batch size == 1"
    assert c == n_classes

    labels = jnp.concatenate(target_classes)                       # [T]
    tboxes = jnp.concatenate(target_boxes, axis=0)                 # [T, 4]
    n_targets = int(tboxes.shape[0])
    assert n_targets <= num_queries, "matcher assumes #targets <= #queries"

    # TODO(synk): batch > 1 would map to a leading "parallel" grid axis (one image per
    # TensorCore on v7x); not added because the reference hard-asserts bs == 1.
    return _push_pull_loss_jit(predicted_classes, predicted_boxes, labels, tboxes, scales,
                               n_classes=n_classes)


# ----------------------------------------------------------------------------- demo

if __name__ == "__main__":
    key = jax.random.PRNGKey(0)
    bs, num_queries, n_classes, num_targets = 1, 8, 16, 3
    k1, k2, k3, k4, k5, k6 = jax.random.split(key, 6)

    # probabilities in (0,1): fed directly into BCELoss in the reference module
    predicted_classes = jax.random.uniform(k1, (bs, num_queries, n_classes),
                                           jnp.float32, 0.05, 0.95)
    # valid xyxy boxes (x1>=x0, y1>=y0) so generalized_box_iou's asserts hold
    xy0 = jax.random.uniform(k2, (bs, num_queries, 2), jnp.float32, 0.0, 0.4)
    wh = jax.random.uniform(k3, (bs, num_queries, 2), jnp.float32, 0.1, 0.5)
    predicted_boxes = jnp.concatenate([xy0, xy0 + wh], axis=-1)

    t_xy0 = jax.random.uniform(k4, (num_targets, 2), jnp.float32, 0.0, 0.4)
    t_wh = jax.random.uniform(k5, (num_targets, 2), jnp.float32, 0.1, 0.5)
    target_boxes = [jnp.concatenate([t_xy0, t_xy0 + t_wh], axis=-1)]
    target_classes = [jax.random.randint(k6, (num_targets,), 0, n_classes)]

    # deterministic BCE class weights ("scales" parameter of the module)
    scales = jnp.linspace(0.5, 1.5, n_classes, dtype=jnp.float32)

    losses = push_pull_loss(predicted_classes, target_classes,
                            predicted_boxes, target_boxes, scales, n_classes)
    losses = {k: jax.block_until_ready(v) for k, v in losses.items()}
    assert all(bool(jnp.isfinite(v)) for v in losses.values())
    print("KERNEL_OK")
</pallas_src>

<mosaic_0001>
module attributes {stable_mosaic.version = 11 : i64} {
  func.func @kernel(%arg0: memref<8x16xf32, #tpu.memory_space<vmem>>, %arg1: memref<1x128xf32, #tpu.memory_space<vmem>>, %arg2: memref<8x4xf32, #tpu.memory_space<vmem>>, %arg3: memref<4x128xf32, #tpu.memory_space<vmem>>, %arg4: memref<8x128xf32, #tpu.memory_space<vmem>>) attributes {dimension_semantics = [], scalar_prefetch = 0 : i64, scratch_operands = 0 : i64, tpu.core_type = #tpu.core_type<tc>} {
    %c0 = arith.constant 0 : index
    %c0_0 = arith.constant 0 : index
    %0 = vector.load %arg0[%c0, %c0_0] : memref<8x16xf32, #tpu.memory_space<vmem>>, vector<8x16xf32>
    %cst = arith.constant dense<0xFF800000> : vector<8xf32>
    %1 = vector.multi_reduction <maximumf>, %0, %cst [1] : vector<8x16xf32> to vector<8xf32>
    %2 = vector.shape_cast %1 : vector<8xf32> to vector<8x1xf32>
    %3 = vector.broadcast %2 : vector<8x1xf32> to vector<8x16xf32>
    %4 = arith.subf %0, %3 : vector<8x16xf32>
    %5 = math.exp %4 : vector<8x16xf32>
    %cst_1 = arith.constant dense<0.000000e+00> : vector<8xf32>
    %6 = vector.multi_reduction <add>, %5, %cst_1 [1] : vector<8x16xf32> to vector<8xf32>
    %7 = vector.shape_cast %6 : vector<8xf32> to vector<8x1xf32>
    %8 = vector.broadcast %7 : vector<8x1xf32> to vector<8x16xf32>
    %9 = arith.divf %5, %8 : vector<8x16xf32>
    %c0_2 = arith.constant 0 : index
    %c0_3 = arith.constant 0 : index
    %10 = vector.load %arg1[%c0_2, %c0_3] : memref<1x128xf32, #tpu.memory_space<vmem>>, vector<1x128xf32>
    %11 = tpu.iota {dimensions = array<i32: 0>} : vector<16x128xi32>
    %12 = arith.sitofp %11 : vector<16x128xi32> to vector<16x128xf32>
    %13 = vector.broadcast %10 : vector<1x128xf32> to vector<16x128xf32>
    %14 = arith.cmpf oeq, %12, %13 : vector<16x128xf32>
    %15 = arith.extui %14 : vector<16x128xi1> to vector<16x128xi32>
    %16 = arith.sitofp %15 : vector<16x128xi32> to vector<16x128xf32>
    %17 = arith.truncf %16 : vector<16x128xf32> to vector<16x128xbf16>
    %18 = arith.truncf %9 : vector<8x16xf32> to vector<8x16xbf16>
    %cst_4 = arith.constant dense<0.000000e+00> : vector<8x128xf32>
    %19 = tpu.matmul %18, %17, %cst_4 {dimension_numbers = #tpu.dot_dimension_numbers<[1], [0], [0], [1], [0, 0, 1, 1], [], []>} : vector<8x16xbf16>, vector<16x128xbf16>, vector<8x128xf32> -> vector<8x128xf32>
    %cst_5 = arith.constant 0.000000e+00 : f32
    %20 = vector.broadcast %cst_5 : f32 to vector<8x128xf32>
    %21 = arith.subf %20, %19 : vector<8x128xf32>
    %c0_6 = arith.constant 0 : index
    %c0_7 = arith.constant 0 : index
    %22 = vector.load %arg2[%c0_6, %c0_7] : memref<8x4xf32, #tpu.memory_space<vmem>>, vector<8x4xf32>
    %c0_8 = arith.constant 0 : index
    %c0_9 = arith.constant 0 : index
    %23 = vector.load %arg3[%c0_8, %c0_9] : memref<4x128xf32, #tpu.memory_space<vmem>>, vector<4x128xf32>
    %24 = vector.extract_strided_slice %22 {offsets = [0, 0], sizes = [8, 1], strides = [1, 1]} : vector<8x4xf32> to vector<8x1xf32>
    %25 = vector.extract_strided_slice %22 {offsets = [0, 1], sizes = [8, 1], strides = [1, 1]} : vector<8x4xf32> to vector<8x1xf32>
    %26 = vector.extract_strided_slice %22 {offsets = [0, 2], sizes = [8, 1], strides = [1, 1]} : vector<8x4xf32> to vector<8x1xf32>
    %27 = vector.extract_strided_slice %22 {offsets = [0, 3], sizes = [8, 1], strides = [1, 1]} : vector<8x4xf32> to vector<8x1xf32>
    %28 = vector.extract_strided_slice %23 {offsets = [0, 0], sizes = [1, 128], strides = [1, 1]} : vector<4x128xf32> to vector<1x128xf32>
    %29 = vector.extract_strided_slice %23 {offsets = [1, 0], sizes = [1, 128], strides = [1, 1]} : vector<4x128xf32> to vector<1x128xf32>
    %30 = vector.extract_strided_slice %23 {offsets = [2, 0], sizes = [1, 128], strides = [1, 1]} : vector<4x128xf32> to vector<1x128xf32>
    %31 = vector.extract_strided_slice %23 {offsets = [3, 0], sizes = [1, 128], strides = [1, 1]} : vector<4x128xf32> to vector<1x128xf32>
    %32 = vector.broadcast %24 : vector<8x1xf32> to vector<8x128xf32>
    %33 = vector.broadcast %28 : vector<1x128xf32> to vector<8x128xf32>
    %34 = arith.subf %32, %33 : vector<8x128xf32>
    %35 = math.absf %34 : vector<8x128xf32>
    %36 = vector.broadcast %25 : vector<8x1xf32> to vector<8x128xf32>
    %37 = vector.broadcast %29 : vector<1x128xf32> to vector<8x128xf32>
    %38 = arith.subf %36, %37 : vector<8x128xf32>
    %39 = math.absf %38 : vector<8x128xf32>
    %40 = arith.addf %35, %39 : vector<8x128xf32>
    %41 = vector.broadcast %26 : vector<8x1xf32> to vector<8x128xf32>
    %42 = vector.broadcast %30 : vector<1x128xf32> to vector<8x128xf32>
    %43 = arith.subf %41, %42 : vector<8x128xf32>
    %44 = math.absf %43 : vector<8x128xf32>
    %45 = arith.addf %40, %44 : vector<8x128xf32>
    %46 = vector.broadcast %27 : vector<8x1xf32> to vector<8x128xf32>
    %47 = vector.broadcast %31 : vector<1x128xf32> to vector<8x128xf32>
    %48 = arith.subf %46, %47 : vector<8x128xf32>
    %49 = math.absf %48 : vector<8x128xf32>
    %50 = arith.addf %45, %49 : vector<8x128xf32>
    %51 = arith.subf %26, %24 : vector<8x1xf32>
    %52 = arith.subf %27, %25 : vector<8x1xf32>
    %53 = arith.mulf %51, %52 : vector<8x1xf32>
    %54 = arith.subf %30, %28 : vector<1x128xf32>
    %55 = arith.subf %31, %29 : vector<1x128xf32>
    %56 = arith.mulf %54, %55 : vector<1x128xf32>
    %57 = vector.broadcast %24 : vector<8x1xf32> to vector<8x128xf32>
    %58 = vector.broadcast %28 : vector<1x128xf32> to vector<8x128xf32>
    %59 = arith.maximumf %57, %58 : vector<8x128xf32>
    %60 = vector.broadcast %25 : vector<8x1xf32> to vector<8x128xf32>
    %61 = vector.broadcast %29 : vector<1x128xf32> to vector<8x128xf32>
    %62 = arith.maximumf %60, %61 : vector<8x128xf32>
    %63 = vector.broadcast %26 : vector<8x1xf32> to vector<8x128xf32>
    %64 = vector.broadcast %30 : vector<1x128xf32> to vector<8x128xf32>
    %65 = arith.minimumf %63, %64 : vector<8x128xf32>
    %66 = vector.broadcast %27 : vector<8x1xf32> to vector<8x128xf32>
    %67 = vector.broadcast %31 : vector<1x128xf32> to vector<8x128xf32>
    %68 = arith.minimumf %66, %67 : vector<8x128xf32>
    %69 = arith.subf %65, %59 : vector<8x128xf32>
    %cst_10 = arith.constant 0.000000e+00 : f32
    %70 = vector.broadcast %cst_10 : f32 to vector<8x128xf32>
    %71 = arith.maximumf %69, %70 : vector<8x128xf32>
    %72 = arith.subf %68, %62 : vector<8x128xf32>
    %cst_11 = arith.constant 0.000000e+00 : f32
    %73 = vector.broadcast %cst_11 : f32 to vector<8x128xf32>
    %74 = arith.maximumf %72, %73 : vector<8x128xf32>
    %75 = arith.mulf %71, %74 : vector<8x128xf32>
    %76 = vector.broadcast %53 : vector<8x1xf32> to vector<8x128xf32>
    %77 = vector.broadcast %56 : vector<1x128xf32> to vector<8x128xf32>
    %78 = arith.addf %76, %77 : vector<8x128xf32>
    %79 = arith.subf %78, %75 : vector<8x128xf32>
    %cst_12 = arith.constant 9.99999971E-10 : f32
    %80 = vector.broadcast %cst_12 : f32 to vector<8x128xf32>
    %81 = arith.maximumf %79, %80 : vector<8x128xf32>
    %82 = arith.divf %75, %81 : vector<8x128xf32>
    %83 = vector.broadcast %24 : vector<8x1xf32> to vector<8x128xf32>
    %84 = vector.broadcast %28 : vector<1x128xf32> to vector<8x128xf32>
    %85 = arith.minimumf %83, %84 : vector<8x128xf32>
    %86 = vector.broadcast %25 : vector<8x1xf32> to vector<8x128xf32>
    %87 = vector.broadcast %29 : vector<1x128xf32> to vector<8x128xf32>
    %88 = arith.minimumf %86, %87 : vector<8x128xf32>
    %89 = vector.broadcast %26 : vector<8x1xf32> to vector<8x128xf32>
    %90 = vector.broadcast %30 : vector<1x128xf32> to vector<8x128xf32>
    %91 = arith.maximumf %89, %90 : vector<8x128xf32>
    %92 = vector.broadcast %27 : vector<8x1xf32> to vector<8x128xf32>
    %93 = vector.broadcast %31 : vector<1x128xf32> to vector<8x128xf32>
    %94 = arith.maximumf %92, %93 : vector<8x128xf32>
    %95 = arith.subf %91, %85 : vector<8x128xf32>
    %cst_13 = arith.constant 0.000000e+00 : f32
    %96 = vector.broadcast %cst_13 : f32 to vector<8x128xf32>
    %97 = arith.maximumf %95, %96 : vector<8x128xf32>
    %98 = arith.subf %94, %88 : vector<8x128xf32>
    %cst_14 = arith.constant 0.000000e+00 : f32
    %99 = vector.broadcast %cst_14 : f32 to vector<8x128xf32>
    %100 = arith.maximumf %98, %99 : vector<8x128xf32>
    %101 = arith.mulf %97, %100 : vector<8x128xf32>
    %102 = arith.subf %101, %79 : vector<8x128xf32>
    %cst_15 = arith.constant 9.99999971E-10 : f32
    %103 = vector.broadcast %cst_15 : f32 to vector<8x128xf32>
    %104 = arith.maximumf %101, %103 : vector<8x128xf32>
    %105 = arith.divf %102, %104 : vector<8x128xf32>
    %106 = arith.subf %82, %105 : vector<8x128xf32>
    %cst_16 = arith.constant 0.000000e+00 : f32
    %107 = vector.broadcast %cst_16 : f32 to vector<8x128xf32>
    %108 = arith.subf %107, %106 : vector<8x128xf32>
    %109 = arith.addf %50, %21 : vector<8x128xf32>
    %110 = arith.addf %109, %108 : vector<8x128xf32>
    %c0_17 = arith.constant 0 : index
    %c0_18 = arith.constant 0 : index
    %111 = vector.load %arg4[%c0_17, %c0_18] : memref<8x128xf32, #tpu.memory_space<vmem>>, vector<8x128xf32>
    tpu.vector_store %arg4[%c0_17, %c0_18], %110 {strides = array<i32>} : memref<8x128xf32, #tpu.memory_space<vmem>>, vector<8x128xf32>,
    return
  }
}

module attributes {stable_mosaic.version = 11 : i64} {
  func.func @kernel(%arg0: memref<8x16xf32, #tpu.memory_space<vmem>>, %arg1: memref<1x16xf32, #tpu.memory_space<vmem>>, %arg2: memref<8x4xf32, #tpu.memory_space<vmem>>, %arg3: memref<4x128xf32, #tpu.memory_space<vmem>>, %arg4: memref<1x128xf32, #tpu.memory_space<vmem>>, %arg5: memref<1x128xi32, #tpu.memory_space<vmem>>, %arg6: memref<1x128xf32, #tpu.memory_space<vmem>>) attributes {dimension_semantics = [], scalar_prefetch = 0 : i64, scratch_operands = 0 : i64, tpu.core_type = #tpu.core_type<tc>} {
    %c0 = arith.constant 0 : index
    %c0_0 = arith.constant 0 : index
    %0 = vector.load %arg0[%c0, %c0_0] : memref<8x16xf32, #tpu.memory_space<vmem>>, vector<8x16xf32>
    %c0_1 = arith.constant 0 : index
    %c0_2 = arith.constant 0 : index
    %1 = vector.load %arg1[%c0_1, %c0_2] : memref<1x16xf32, #tpu.memory_space<vmem>>, vector<1x16xf32>
    %c0_3 = arith.constant 0 : index
    %c0_4 = arith.constant 0 : index
    %2 = vector.load %arg2[%c0_3, %c0_4] : memref<8x4xf32, #tpu.memory_space<vmem>>, vector<8x4xf32>
    %c0_5 = arith.constant 0 : index
    %c0_6 = arith.constant 0 : index
    %3 = vector.load %arg3[%c0_5, %c0_6] : memref<4x128xf32, #tpu.memory_space<vmem>>, vector<4x128xf32>
    %c0_7 = arith.constant 0 : index
    %c0_8 = arith.constant 0 : index
    %4 = vector.load %arg4[%c0_7, %c0_8] : memref<1x128xf32, #tpu.memory_space<vmem>>, vector<1x128xf32>
    %c0_9 = arith.constant 0 : index
    %c0_10 = arith.constant 0 : index
    %5 = vector.load %arg5[%c0_9, %c0_10] : memref<1x128xi32, #tpu.memory_space<vmem>>, vector<1x128xi32>
    %6 = tpu.iota {dimensions = array<i32: 0>} : vector<8x128xi32>
    %7 = vector.broadcast %5 : vector<1x128xi32> to vector<8x128xi32>
    %8 = arith.cmpi eq, %6, %7 : vector<8x128xi32>
    %9 = arith.extui %8 : vector<8x128xi1> to vector<8x128xi32>
    %10 = arith.sitofp %9 : vector<8x128xi32> to vector<8x128xf32>
    %cst = arith.constant dense<0.000000e+00> : vector<8xf32>
    %11 = vector.multi_reduction <add>, %10, %cst [1] : vector<8x128xf32> to vector<8xf32>
    %12 = vector.shape_cast %11 : vector<8xf32> to vector<8x1xf32>
    %13 = vector.broadcast %4 : vector<1x128xf32> to vector<8x128xf32>
    %14 = arith.mulf %10, %13 : vector<8x128xf32>
    %cst_11 = arith.constant dense<0.000000e+00> : vector<8xf32>
    %15 = vector.multi_reduction <add>, %14, %cst_11 [1] : vector<8x128xf32> to vector<8xf32>
    %16 = vector.shape_cast %15 : vector<8xf32> to vector<8x1xf32>
    %17 = vector.extract_strided_slice %3 {offsets = [0, 0], sizes = [1, 128], strides = [1, 1]} : vector<4x128xf32> to vector<1x128xf32>
    %18 = vector.broadcast %17 : vector<1x128xf32> to vector<8x128xf32>
    %19 = arith.mulf %10, %18 : vector<8x128xf32>
    %cst_12 = arith.constant dense<0.000000e+00> : vector<8xf32>
    %20 = vector.multi_reduction <add>, %19, %cst_12 [1] : vector<8x128xf32> to vector<8xf32>
    %21 = vector.shape_cast %20 : vector<8xf32> to vector<8x1xf32>
    %22 = vector.extract_strided_slice %3 {offsets = [1, 0], sizes = [1, 128], strides = [1, 1]} : vector<4x128xf32> to vector<1x128xf32>
    %23 = vector.broadcast %22 : vector<1x128xf32> to vector<8x128xf32>
    %24 = arith.mulf %10, %23 : vector<8x128xf32>
    %cst_13 = arith.constant dense<0.000000e+00> : vector<8xf32>
    %25 = vector.multi_reduction <add>, %24, %cst_13 [1] : vector<8x128xf32> to vector<8xf32>
    %26 = vector.shape_cast %25 : vector<8xf32> to vector<8x1xf32>
    %27 = vector.extract_strided_slice %3 {offsets = [2, 0], sizes = [1, 128], strides = [1, 1]} : vector<4x128xf32> to vector<1x128xf32>
    %28 = vector.broadcast %27 : vector<1x128xf32> to vector<8x128xf32>
    %29 = arith.mulf %10, %28 : vector<8x128xf32>
    %cst_14 = arith.constant dense<0.000000e+00> : vector<8xf32>
    %30 = vector.multi_reduction <add>, %29, %cst_14 [1] : vector<8x128xf32> to vector<8xf32>
    %31 = vector.shape_cast %30 : vector<8xf32> to vector<8x1xf32>
    %32 = vector.extract_strided_slice %3 {offsets = [3, 0], sizes = [1, 128], strides = [1, 1]} : vector<4x128xf32> to vector<1x128xf32>
    %33 = vector.broadcast %32 : vector<1x128xf32> to vector<8x128xf32>
    %34 = arith.mulf %10, %33 : vector<8x128xf32>
    %cst_15 = arith.constant dense<0.000000e+00> : vector<8xf32>
    %35 = vector.multi_reduction <add>, %34, %cst_15 [1] : vector<8x128xf32> to vector<8xf32>
    %36 = vector.shape_cast %35 : vector<8xf32> to vector<8x1xf32>
    %37 = vector.extract_strided_slice %2 {offsets = [0, 0], sizes = [8, 1], strides = [1, 1]} : vector<8x4xf32> to vector<8x1xf32>
    %38 = vector.extract_strided_slice %2 {offsets = [0, 1], sizes = [8, 1], strides = [1, 1]} : vector<8x4xf32> to vector<8x1xf32>
    %39 = vector.extract_strided_slice %2 {offsets = [0, 2], sizes = [8, 1], strides = [1, 1]} : vector<8x4xf32> to vector<8x1xf32>
    %40 = vector.extract_strided_slice %2 {offsets = [0, 3], sizes = [8, 1], strides = [1, 1]} : vector<8x4xf32> to vector<8x1xf32>
    %41 = arith.subf %37, %21 : vector<8x1xf32>
    %42 = math.absf %41 : vector<8x1xf32>
    %43 = arith.subf %38, %26 : vector<8x1xf32>
    %44 = math.absf %43 : vector<8x1xf32>
    %45 = arith.addf %42, %44 : vector<8x1xf32>
    %46 = arith.subf %39, %31 : vector<8x1xf32>
    %47 = math.absf %46 : vector<8x1xf32>
    %48 = arith.addf %45, %47 : vector<8x1xf32>
    %49 = arith.subf %40, %36 : vector<8x1xf32>
    %50 = math.absf %49 : vector<8x1xf32>
    %51 = arith.addf %48, %50 : vector<8x1xf32>
    %52 = arith.mulf %51, %12 : vector<8x1xf32>
    %cst_16 = arith.constant dense<0.000000e+00> : vector<1xf32>
    %53 = vector.multi_reduction <add>, %52, %cst_16 [0] : vector<8x1xf32> to vector<1xf32>
    %54 = vector.shape_cast %53 : vector<1xf32> to vector<1x1xf32>
    %cst_17 = arith.constant 0.333333343 : f32
    %55 = vector.broadcast %cst_17 : f32 to vector<1x1xf32>
    %56 = arith.mulf %54, %55 : vector<1x1xf32>
    %57 = arith.subf %39, %37 : vector<8x1xf32>
    %58 = arith.subf %40, %38 : vector<8x1xf32>
    %59 = arith.mulf %57, %58 : vector<8x1xf32>
    %60 = arith.subf %31, %21 : vector<8x1xf32>
    %61 = arith.subf %36, %26 : vector<8x1xf32>
    %62 = arith.mulf %60, %61 : vector<8x1xf32>
    %63 = arith.maximumf %37, %21 : vector<8x1xf32>
    %64 = arith.maximumf %38, %26 : vector<8x1xf32>
    %65 = arith.minimumf %39, %31 : vector<8x1xf32>
    %66 = arith.minimumf %40, %36 : vector<8x1xf32>
    %67 = arith.subf %65, %63 : vector<8x1xf32>
    %cst_18 = arith.constant 0.000000e+00 : f32
    %68 = vector.broadcast %cst_18 : f32 to vector<8x1xf32>
    %69 = arith.maximumf %67, %68 : vector<8x1xf32>
    %70 = arith.subf %66, %64 : vector<8x1xf32>
    %cst_19 = arith.constant 0.000000e+00 : f32
    %71 = vector.broadcast %cst_19 : f32 to vector<8x1xf32>
    %72 = arith.maximumf %70, %71 : vector<8x1xf32>
    %73 = arith.mulf %69, %72 : vector<8x1xf32>
    %74 = arith.addf %59, %62 : vector<8x1xf32>
    %75 = arith.subf %74, %73 : vector<8x1xf32>
    %cst_20 = arith.constant 9.99999971E-10 : f32
    %76 = vector.broadcast %cst_20 : f32 to vector<8x1xf32>
    %77 = arith.maximumf %75, %76 : vector<8x1xf32>
    %78 = arith.divf %73, %77 : vector<8x1xf32>
    %79 = arith.minimumf %37, %21 : vector<8x1xf32>
    %80 = arith.minimumf %38, %26 : vector<8x1xf32>
    %81 = arith.maximumf %39, %31 : vector<8x1xf32>
    %82 = arith.maximumf %40, %36 : vector<8x1xf32>
    %83 = arith.subf %81, %79 : vector<8x1xf32>
    %cst_21 = arith.constant 0.000000e+00 : f32
    %84 = vector.broadcast %cst_21 : f32 to vector<8x1xf32>
    %85 = arith.maximumf %83, %84 : vector<8x1xf32>
    %86 = arith.subf %82, %80 : vector<8x1xf32>
    %cst_22 = arith.constant 0.000000e+00 : f32
    %87 = vector.broadcast %cst_22 : f32 to vector<8x1xf32>
    %88 = arith.maximumf %86, %87 : vector<8x1xf32>
    %89 = arith.mulf %85, %88 : vector<8x1xf32>
    %90 = arith.subf %89, %75 : vector<8x1xf32>
    %cst_23 = arith.constant 9.99999971E-10 : f32
    %91 = vector.broadcast %cst_23 : f32 to vector<8x1xf32>
    %92 = arith.maximumf %89, %91 : vector<8x1xf32>
    %93 = arith.divf %90, %92 : vector<8x1xf32>
    %94 = arith.subf %78, %93 : vector<8x1xf32>
    %cst_24 = arith.constant 1.000000e+00 : f32
    %95 = vector.broadcast %cst_24 : f32 to vector<8x1xf32>
    %96 = arith.subf %95, %94 : vector<8x1xf32>
    %97 = arith.mulf %96, %12 : vector<8x1xf32>
    %cst_25 = arith.constant dense<0.000000e+00> : vector<1xf32>
    %98 = vector.multi_reduction <add>, %97, %cst_25 [0] : vector<8x1xf32> to vector<1xf32>
    %99 = vector.shape_cast %98 : vector<1xf32> to vector<1x1xf32>
    %cst_26 = arith.constant 0.333333343 : f32
    %100 = vector.broadcast %cst_26 : f32 to vector<1x1xf32>
    %101 = arith.mulf %99, %100 : vector<1x1xf32>
    %cst_27 = arith.constant 1.000000e+00 : f32
    %102 = vector.broadcast %cst_27 : f32 to vector<8x16xf32>
    %103 = arith.subf %102, %0 : vector<8x16xf32>
    %104 = math.log %103 : vector<8x16xf32>
    %cst_28 = arith.constant -1.000000e+02 : f32
    %105 = vector.broadcast %cst_28 : f32 to vector<8x16xf32>
    %106 = arith.maximumf %104, %105 : vector<8x16xf32>
    %cst_29 = arith.constant 0.000000e+00 : f32
    %107 = vector.broadcast %cst_29 : f32 to vector<1x16xf32>
    %108 = arith.subf %107, %1 : vector<1x16xf32>
    %109 = vector.broadcast %108 : vector<1x16xf32> to vector<8x16xf32>
    %110 = arith.mulf %109, %106 : vector<8x16xf32>
    %cst_30 = arith.constant 0.000000e+00 : f32
    %111 = vector.broadcast %cst_30 : f32 to vector<8x16xf32>
    %112 = arith.subf %111, %110 : vector<8x16xf32>
    %113 = math.exp %112 : vector<8x16xf32>
    %cst_31 = arith.constant 1.000000e+00 : f32
    %114 = vector.broadcast %cst_31 : f32 to vector<8x16xf32>
    %115 = arith.subf %114, %113 : vector<8x16xf32>
    %116 = arith.mulf %115, %115 : vector<8x16xf32>
    %117 = arith.mulf %116, %110 : vector<8x16xf32>
    %cst_32 = arith.constant dense<0.000000e+00> : vector<8xf32>
    %118 = vector.multi_reduction <add>, %117, %cst_32 [1] : vector<8x16xf32> to vector<8xf32>
    %119 = vector.shape_cast %118 : vector<8xf32> to vector<8x1xf32>
    %cst_33 = arith.constant 1.000000e+00 : f32
    %120 = vector.broadcast %cst_33 : f32 to vector<8x1xf32>
    %121 = arith.subf %120, %12 : vector<8x1xf32>
    %122 = arith.mulf %119, %121 : vector<8x1xf32>
    %cst_34 = arith.constant dense<0.000000e+00> : vector<1xf32>
    %123 = vector.multi_reduction <add>, %122, %cst_34 [0] : vector<8x1xf32> to vector<1xf32>
    %124 = vector.shape_cast %123 : vector<1xf32> to vector<1x1xf32>
    %cst_35 = arith.constant 6.250000e-02 : f32
    %125 = vector.broadcast %cst_35 : f32 to vector<1x1xf32>
    %126 = arith.mulf %124, %125 : vector<1x1xf32>
    %127 = tpu.iota {dimensions = array<i32: 1>} : vector<8x16xi32>
    %128 = arith.sitofp %127 : vector<8x16xi32> to vector<8x16xf32>
    %129 = vector.broadcast %16 : vector<8x1xf32> to vector<8x16xf32>
    %130 = arith.cmpf oeq, %128, %129 : vector<8x16xf32>
    %131 = arith.extui %130 : vector<8x16xi1> to vector<8x16xi32>
    %132 = arith.sitofp %131 : vector<8x16xi32> to vector<8x16xf32>
    %133 = vector.broadcast %12 : vector<8x1xf32> to vector<8x16xf32>
    %134 = arith.mulf %132, %133 : vector<8x16xf32>
    %135 = arith.mulf %134, %0 : vector<8x16xf32>
    %cst_36 = arith.constant dense<0.000000e+00> : vector<8xf32>
    %136 = vector.multi_reduction <add>, %135, %cst_36 [1] : vector<8x16xf32> to vector<8xf32>
    %137 = vector.shape_cast %136 : vector<8xf32> to vector<8x1xf32>
    %138 = vector.broadcast %1 : vector<1x16xf32> to vector<8x16xf32>
    %139 = arith.mulf %134, %138 : vector<8x16xf32>
    %cst_37 = arith.constant dense<0.000000e+00> : vector<8xf32>
    %140 = vector.multi_reduction <add>, %139, %cst_37 [1] : vector<8x16xf32> to vector<8xf32>
    %141 = vector.shape_cast %140 : vector<8xf32> to vector<8x1xf32>
    %142 = arith.mulf %134, %117 : vector<8x16xf32>
    %cst_38 = arith.constant dense<0.000000e+00> : vector<8xf32>
    %143 = vector.multi_reduction <add>, %142, %cst_38 [1] : vector<8x16xf32> to vector<8xf32>
    %144 = vector.shape_cast %143 : vector<8xf32> to vector<8x1xf32>
    %145 = math.log %137 : vector<8x1xf32>
    %cst_39 = arith.constant -1.000000e+02 : f32
    %146 = vector.broadcast %cst_39 : f32 to vector<8x1xf32>
    %147 = arith.maximumf %145, %146 : vector<8x1xf32>
    %cst_40 = arith.constant 0.000000e+00 : f32
    %148 = vector.broadcast %cst_40 : f32 to vector<8x1xf32>
    %149 = arith.subf %148, %141 : vector<8x1xf32>
    %150 = arith.mulf %149, %147 : vector<8x1xf32>
    %cst_41 = arith.constant 0.000000e+00 : f32
    %151 = vector.broadcast %cst_41 : f32 to vector<8x1xf32>
    %152 = arith.subf %151, %150 : vector<8x1xf32>
    %153 = math.exp %152 : vector<8x1xf32>
    %cst_42 = arith.constant 1.000000e+00 : f32
    %154 = vector.broadcast %cst_42 : f32 to vector<8x1xf32>
    %155 = arith.subf %154, %153 : vector<8x1xf32>
    %156 = arith.mulf %155, %155 : vector<8x1xf32>
    %157 = arith.mulf %156, %150 : vector<8x1xf32>
    %cst_43 = arith.constant 1.000000e+01 : f32
    %158 = vector.broadcast %cst_43 : f32 to vector<8x1xf32>
    %159 = arith.mulf %157, %158 : vector<8x1xf32>
    %160 = arith.subf %119, %144 : vector<8x1xf32>
    %161 = arith.addf %160, %159 : vector<8x1xf32>
    %162 = arith.mulf %161, %12 : vector<8x1xf32>
    %cst_44 = arith.constant dense<0.000000e+00> : vector<1xf32>
    %163 = vector.multi_reduction <add>, %162, %cst_44 [0] : vector<8x1xf32> to vector<1xf32>
    %164 = vector.shape_cast %163 : vector<1xf32> to vector<1x1xf32>
    %cst_45 = arith.constant 0.333333343 : f32
    %165 = vector.broadcast %cst_45 : f32 to vector<1x1xf32>
    %166 = arith.mulf %164, %165 : vector<1x1xf32>
    %167 = tpu.iota {dimensions = array<i32: 1>} : vector<1x128xi32>
    %c0_i32 = arith.constant 0 : i32
    %168 = vector.broadcast %c0_i32 : i32 to vector<1x128xi32>
    %169 = arith.cmpi eq, %167, %168 : vector<1x128xi32>
    %c1_i32 = arith.constant 1 : i32
    %170 = vector.broadcast %c1_i32 : i32 to vector<1x128xi32>
    %171 = arith.cmpi eq, %167, %170 : vector<1x128xi32>
    %c2_i32 = arith.constant 2 : i32
    %172 = vector.broadcast %c2_i32 : i32 to vector<1x128xi32>
    %173 = arith.cmpi eq, %167, %172 : vector<1x128xi32>
    %c3_i32 = arith.constant 3 : i32
    %174 = vector.broadcast %c3_i32 : i32 to vector<1x128xi32>
    %175 = arith.cmpi eq, %167, %174 : vector<1x128xi32>
    %cst_46 = arith.constant 0.000000e+00 : f32
    %176 = vector.broadcast %cst_46 : f32 to vector<1x128xf32>
    %177 = vector.shape_cast %101 : vector<1x1xf32> to vector<1x1xf32>
    %178 = vector.broadcast %177 : vector<1x1xf32> to vector<1x128xf32>
    %179 = arith.select %175, %178, %176 : vector<1x128xi1>, vector<1x128xf32>
    %180 = vector.shape_cast %56 : vector<1x1xf32> to vector<1x1xf32>
    %181 = vector.broadcast %180 : vector<1x1xf32> to vector<1x128xf32>
    %182 = arith.select %173, %181, %179 : vector<1x128xi1>, vector<1x128xf32>
    %183 = vector.shape_cast %126 : vector<1x1xf32> to vector<1x1xf32>
    %184 = vector.broadcast %183 : vector<1x1xf32> to vector<1x128xf32>
    %185 = arith.select %171, %184, %182 : vector<1x128xi1>, vector<1x128xf32>
    %186 = vector.shape_cast %166 : vector<1x1xf32> to vector<1x1xf32>
    %187 = vector.broadcast %186 : vector<1x1xf32> to vector<1x128xf32>
    %188 = arith.select %169, %187, %185 : vector<1x128xi1>, vector<1x128xf32>
    %c0_47 = arith.constant 0 : index
    %c0_48 = arith.constant 0 : index
    %189 = vector.load %arg6[%c0_47, %c0_48] : memref<1x128xf32, #tpu.memory_space<vmem>>, vector<1x128xf32>
    tpu.vector_store %arg6[%c0_47, %c0_48], %188 {strides = array<i32>} : memref<1x128xf32, #tpu.memory_space<vmem>>, vector<1x128xf32>,
    return
  }
}

</mosaic_0001>

<llo_original>
// kernel: _push_pull_loss_jit.2
$region0: #{_push_pull_loss_jit.2}
  #allocation0 [shape = 'u32[]', space=smem, size = 0x4, offset = 0x4, fixed_abs, tag = 'smem constant byte address 0x4 - core index']
  #allocation1 [shape = 'u32[144,128]{1,0:T(1,128)}', space=vmem, size = 0x12000, scoped, tag = 'internal scratch']
  %s0 = inlined_call_operand.vmem [shape: f32[8,16], index: 0, kind: input, shape index: {}]
  %s1 = inlined_call_operand.vmem [shape: f32[1,128], index: 1, kind: input, shape index: {}]
  %s2 = inlined_call_operand.vmem [shape: f32[8,4], index: 2, kind: input, shape index: {}]
  %s3 = inlined_call_operand.vmem [shape: f32[4,128], index: 3, kind: input, shape index: {}]
  %s4 = inlined_call_operand.vmem [shape: f32[8,128], index: 4, kind: output, shape index: {}]
  %s5 = sld [smem:[#allocation0]]
  $region26: #{_push_pull_loss_jit.2} parent=0
    _
  %s7 = ssub.s32 1, %s5
  %s8 = scalar_select 0, %s7, %s5
  // Predicated region
  $region2: #{_push_pull_loss_jit.2} parent=0 // pred_check
    _
  $region3: #{_push_pull_loss_jit.2} parent=0 // pred_check_branch
    %10 = sbr.rel (0) target = $region5
  $region4: #{_push_pull_loss_jit.2} parent=0 // pred_region
    _
  $region5: #{_push_pull_loss_jit.2} parent=0 // pred_fallthru
    _
  // Predicated region
  $region6: #{_push_pull_loss_jit.2} parent=0 // pred_check
    _
  $region7: #{_push_pull_loss_jit.2} parent=0 // pred_check_branch
    %12 = sbr.rel (0) target = $region9
  $region8: #{_push_pull_loss_jit.2} parent=0 // pred_region
    _
  $region9: #{_push_pull_loss_jit.2} parent=0 // pred_fallthru
    _
  // Predicated region
  $region10: #{_push_pull_loss_jit.2} parent=0 // pred_check
    _
  $region11: #{_push_pull_loss_jit.2} parent=0 // pred_check_branch
    %14 = sbr.rel (0) target = $region13
  $region12: #{_push_pull_loss_jit.2} parent=0 // pred_region
    _
  $region13: #{_push_pull_loss_jit.2} parent=0 // pred_fallthru
    _
  // Predicated region
  $region14: #{_push_pull_loss_jit.2} parent=0 // pred_check
    _
  $region15: #{_push_pull_loss_jit.2} parent=0 // pred_check_branch
    %16 = sbr.rel (0) target = $region17
  $region16: #{_push_pull_loss_jit.2} parent=0 // pred_region
    _
  $region17: #{_push_pull_loss_jit.2} parent=0 // pred_fallthru
    _
  %v18 = vld [vmem:[%s0] sm:$0xff]
  %vm19 = vcmask 130048
  %v20 = vsel %vm19, %v18, -inf
  %21 = vmax.xlane.f32.xlu0 %v20
  %v22 = vpop.xlane.xlu0 %21
  %v23 = vsub.f32 %v18, %v22
  %v24 = vmul.f32 %v23, 1.442695
  %v25 = vpow.pop %v24
  %v26 = vsel %vm19, %v25, 0.0
  %27 = vadd.xlane.f32.xlu0 %v26
  %v28 = vpop.xlane.xlu0 %27
  %v29 = vrcp.pop %v28
  %v30 = vmul.f32 %v25, %v29
  %v31 = vld [vmem:[%s1] sm:$0x1]
  %v32 = vlaneseq
  %v33 = vshrl.u32 %v32, 7
  %v34 = vadd.s32 %v33, 8
  %v35 = vcvt.s32.f32 %v33
  %v36 = vcvt.s32.f32 %v34
  %v38 = vlaneseq
  %v39 = vshrl.u32 %v38, 7
  %v40 = vsub.s32 0, %v39
  %v41 = vrot.slane %v31, %v40
  %vm43 = vcmp.eq.f32.partialorder %v35, %v41
  %vm44 = vcmp.eq.f32.partialorder %v36, %v41
  %v45 = vsel %vm43, 1, 0
  %v46 = vsel %vm44, 1, 0
  %v47 = vcvt.s32.f32 %v45
  %v48 = vcvt.s32.f32 %v46
  %v49 = vpack.c.bf16 %v48, %v47
  %v50 = vpack.c.bf16 %v30, %v30
  %v52 = vsel %vm19, %v50, 0
  %54 = vmatprep.subr.bf16.mxu0 0
  %55 = vmatpush1.bf16.msra.mxu0 %v49
  %56 = vmatprep.subr.bf16.mxu0 0
  %57 = vmatpush1.bf16.msra.mxu0 0
  %58 = vmatprep.subr.bf16.mxu0 0
  %59 = vmatpush1.bf16.msra.mxu0 0
  %60 = vmatprep.subr.bf16.mxu0 0
  %61 = vmatpush1.bf16.msra.mxu0 0
  %62 = vmatprep.subr.bf16.mxu0 0
  %63 = vmatpush1.bf16.msra.mxu0 0
  %64 = vmatprep.subr.bf16.mxu0 0
  %65 = vmatpush1.bf16.msra.mxu0 0
  %66 = vmatprep.subr.bf16.mxu0 0
  %67 = vmatpush1.bf16.msra.mxu0 0
  %68 = vmatprep.subr.bf16.mxu0 0
  %69 = vmatpush1.bf16.msra.mxu0 0
  %70 = vmatprep.subr.bf16.mxu0 0
  %71 = vmatpush1.bf16.msra.mxu0 0
  %72 = vmatprep.subr.bf16.mxu0 0
  %73 = vmatpush1.bf16.msra.mxu0 0
  %74 = vmatprep.subr.bf16.mxu0 0
  %75 = vmatpush1.bf16.msra.mxu0 0
  %76 = vmatprep.subr.bf16.mxu0 0
  %77 = vmatpush1.bf16.msra.mxu0 0
  %78 = vmatprep.subr.bf16.mxu0 0
  %79 = vmatpush1.bf16.msra.mxu0 0
  %80 = vmatprep.subr.bf16.mxu0 0
  %81 = vmatpush1.bf16.msra.mxu0 0
  %82 = vmatprep.subr.bf16.mxu0 0
  %83 = vmatpush1.bf16.msra.mxu0 0
  %84 = vmatprep.subr.bf16.mxu0 0
  %85 = vmatpush1.bf16.msra.mxu0 0
  %86 = vmatprep.mubr.bf16.mxu0 0
  %87 = vmatmul.mubr.bf16.gmra.mrb[0].mxu0 %v52
  %v88 = vpop.f32.mrb[0].mxu0
  %v89 = vadd.f32 0.0, %v88
  %v90 = vpop.f32.mrb[0].mxu0
  %v91 = vpop.f32.mrb[0].mxu0
  %v92 = vpop.f32.mrb[0].mxu0
  %93 = vdwg.mxu0
  %v94 = vsub.f32 0.0, %v89
  %v95 = vld [vmem:[%s2] sm:$0xff]
  %v96 = vld [vmem:[%s3] sm:$0xf]
  %98 = vset.pattern.permute.xlu0 0
  %99 = vperm.xlu0 %98, %v95
  %v100 = vpop.permute.xlu0 %99
  %v102 = vlaneseq
  %v103 = vshrl.u32 %v102, 7
  %v104 = vsub.s32 0, %v103
  %v105 = vrot.slane %v96, %v104
  %v106 = vsub.f32 %v100, %v105
  %v107 = vand.u32 2147483647, %v106
  %108 = vset.pattern.permute.xlu0 1
  %109 = vperm.xlu0 %108, %v95
  %v110 = vpop.permute.xlu0 %109
  %v112 = vlaneseq
  %v113 = vshrl.u32 %v112, 7
  %v114 = vsub.s32 1, %v113
  %v115 = vrot.slane %v96, %v114
  %v116 = vsub.f32 %v110, %v115
  %v117 = vand.u32 2147483647, %v116
  %v118 = vadd.f32 %v107, %v117
  %119 = vset.pattern.permute.xlu0 2
  %120 = vperm.xlu0 %119, %v95
  %v121 = vpop.permute.xlu0 %120
  %v123 = vlaneseq
  %v124 = vshrl.u32 %v123, 7
  %v125 = vsub.s32 2, %v124
  %v126 = vrot.slane %v96, %v125
  %v127 = vsub.f32 %v121, %v126
  %v128 = vand.u32 2147483647, %v127
  %v129 = vadd.f32 %v118, %v128
  %130 = vset.pattern.permute.xlu0 3
  %131 = vperm.xlu0 %130, %v95
  %v132 = vpop.permute.xlu0 %131
  %v134 = vlaneseq
  %v135 = vshrl.u32 %v134, 7
  %v136 = vsub.s32 3, %v135
  %v137 = vrot.slane %v96, %v136
  %v138 = vsub.f32 %v132, %v137
  %v139 = vand.u32 2147483647, %v138
  %v140 = vadd.f32 %v129, %v139
  %141 = vrot.lane.b32.xlu0 %v95, 2
  %v142 = vpop.permute.xlu0 %141
  %v144 = vsub.f32 %v95, %v142
  %146 = vrot.lane.b32.xlu0 %v144, 127
  %v147 = vpop.permute.xlu0 %146
  %v149 = vmul.f32 %v144, %v147
  %v151 = vrot.slane %v96, 6
  %v153 = vsub.f32 %v96, %v151
  %v155 = vrot.slane %v153, 1
  %v157 = vmul.f32 %v153, %v155
  %v158 = vmax.f32 %v100, %v105
  %v159 = vmax.f32 %v110, %v115
  %v160 = vmin.f32 %v121, %v126
  %v161 = vmin.f32 %v132, %v137
  %v162 = vsub.f32 %v160, %v158
  %v163 = vmax.f32 %v162, 0.0
  %v164 = vsub.f32 %v161, %v159
  %v165 = vmax.f32 %v164, 0.0
  %v166 = vmul.f32 %v163, %v165
  %168 = vset.pattern.permute.xlu0 2
  %169 = vperm.xlu0 %168, %v149
  %v170 = vpop.permute.xlu0 %169
  %v172 = vlaneseq
  %v173 = vshrl.u32 %v172, 7
  %v174 = vsub.s32 2, %v173
  %v175 = vrot.slane %v157, %v174
  %v176 = vadd.f32 %v170, %v175
  %v177 = vsub.f32 %v176, %v166
  %v178 = vmax.f32 %v177, 1e-09
  %v179 = vrcp.pop %v178
  %v180 = vmul.f32 %v166, %v179
  %v181 = vmin.f32 %v100, %v105
  %v182 = vmin.f32 %v110, %v115
  %v183 = vmax.f32 %v121, %v126
  %v184 = vmax.f32 %v132, %v137
  %v185 = vsub.f32 %v183, %v181
  %v186 = vmax.f32 %v185, 0.0
  %v187 = vsub.f32 %v184, %v182
  %v188 = vmax.f32 %v187, 0.0
  %v189 = vmul.f32 %v186, %v188
  %v190 = vsub.f32 %v189, %v177
  %v191 = vmax.f32 %v189, 1e-09
  %v192 = vrcp.pop %v191
  %v193 = vmul.f32 %v190, %v192
  %v194 = vsub.f32 %v180, %v193
  %v195 = vsub.f32 0.0, %v194
  %v196 = vadd.f32 %v140, %v94
  %v197 = vadd.f32 %v196, %v195
  %198 = vst [vmem:[%s4] sm:$0xff] %v197
  // Predicated region
  $region18: #{_push_pull_loss_jit.2} parent=0 // pred_check
    _
  $region19: #{_push_pull_loss_jit.2} parent=0 // pred_check_branch
    %200 = sbr.rel (0) target = $region21
  $region20: #{_push_pull_loss_jit.2} parent=0 // pred_region
    _
  $region21: #{_push_pull_loss_jit.2} parent=0 // pred_fallthru
    _
  // Predicated region
  $region22: #{_push_pull_loss_jit.2} parent=0 // pred_check
    _
  $region23: #{_push_pull_loss_jit.2} parent=0 // pred_check_branch
    %202 = sbr.rel (0) target = $region25
  $region24: #{_push_pull_loss_jit.2} parent=0 // pred_region
    _
  $region25: #{_push_pull_loss_jit.2} parent=0 // pred_fallthru
    _

// kernel: _push_pull_loss_jit.3
$region0: #{_push_pull_loss_jit.3}
  #allocation0 [shape = 'u32[]', space=smem, size = 0x4, offset = 0x4, fixed_abs, tag = 'smem constant byte address 0x4 - core index']
  #allocation1 [shape = 'u32[144,128]{1,0:T(1,128)}', space=vmem, size = 0x12000, scoped, tag = 'internal scratch']
  %s0 = inlined_call_operand.vmem [shape: f32[8,16], index: 0, kind: input, shape index: {}]
  %s1 = inlined_call_operand.vmem [shape: f32[1,16], index: 1, kind: input, shape index: {}]
  %s2 = inlined_call_operand.vmem [shape: f32[8,4], index: 2, kind: input, shape index: {}]
  %s3 = inlined_call_operand.vmem [shape: f32[4,128], index: 3, kind: input, shape index: {}]
  %s4 = inlined_call_operand.vmem [shape: f32[1,128], index: 4, kind: input, shape index: {}]
  %s5 = inlined_call_operand.vmem [shape: s32[1,128], index: 5, kind: input, shape index: {}]
  %s6 = inlined_call_operand.vmem [shape: f32[1,128], index: 6, kind: output, shape index: {}]
  %s7 = sld [smem:[#allocation0]]
  $region34: #{_push_pull_loss_jit.3} parent=0
    _
  %s9 = ssub.s32 1, %s7
  %s10 = scalar_select 0, %s9, %s7
  // Predicated region
  $region2: #{_push_pull_loss_jit.3} parent=0 // pred_check
    _
  $region3: #{_push_pull_loss_jit.3} parent=0 // pred_check_branch
    %12 = sbr.rel (0) target = $region5
  $region4: #{_push_pull_loss_jit.3} parent=0 // pred_region
    _
  $region5: #{_push_pull_loss_jit.3} parent=0 // pred_fallthru
    _
  // Predicated region
  $region6: #{_push_pull_loss_jit.3} parent=0 // pred_check
    _
  $region7: #{_push_pull_loss_jit.3} parent=0 // pred_check_branch
    %14 = sbr.rel (0) target = $region9
  $region8: #{_push_pull_loss_jit.3} parent=0 // pred_region
    _
  $region9: #{_push_pull_loss_jit.3} parent=0 // pred_fallthru
    _
  // Predicated region
  $region10: #{_push_pull_loss_jit.3} parent=0 // pred_check
    _
  $region11: #{_push_pull_loss_jit.3} parent=0 // pred_check_branch
    %16 = sbr.rel (0) target = $region13
  $region12: #{_push_pull_loss_jit.3} parent=0 // pred_region
    _
  $region13: #{_push_pull_loss_jit.3} parent=0 // pred_fallthru
    _
  // Predicated region
  $region14: #{_push_pull_loss_jit.3} parent=0 // pred_check
    _
  $region15: #{_push_pull_loss_jit.3} parent=0 // pred_check_branch
    %18 = sbr.rel (0) target = $region17
  $region16: #{_push_pull_loss_jit.3} parent=0 // pred_region
    _
  $region17: #{_push_pull_loss_jit.3} parent=0 // pred_fallthru
    _
  // Predicated region
  $region18: #{_push_pull_loss_jit.3} parent=0 // pred_check
    _
  $region19: #{_push_pull_loss_jit.3} parent=0 // pred_check_branch
    %20 = sbr.rel (0) target = $region21
  $region20: #{_push_pull_loss_jit.3} parent=0 // pred_region
    _
  $region21: #{_push_pull_loss_jit.3} parent=0 // pred_fallthru
    _
  // Predicated region
  $region22: #{_push_pull_loss_jit.3} parent=0 // pred_check
    _
  $region23: #{_push_pull_loss_jit.3} parent=0 // pred_check_branch
    %22 = sbr.rel (0) target = $region25
  $region24: #{_push_pull_loss_jit.3} parent=0 // pred_region
    _
  $region25: #{_push_pull_loss_jit.3} parent=0 // pred_fallthru
    _
  %v23 = vld [vmem:[%s0] sm:$0xff]
  %v24 = vld [vmem:[%s1] sm:$0x1]
  %v25 = vld [vmem:[%s2] sm:$0xff]
  %v26 = vld [vmem:[%s3] sm:$0xf]
  %v27 = vld [vmem:[%s4] sm:$0x1]
  %v28 = vld [vmem:[%s5] sm:$0x1]
  %v29 = vlaneseq
  %v30 = vshrl.u32 %v29, 7
  %v31 = vlaneseq
  %v32 = vshrl.u32 %v31, 7
  %v33 = vsub.s32 0, %v32
  %v34 = vrot.slane %v28, %v33
  %vm35 = vcmp.eq.s32.totalorder %v30, %v34
  %v36 = vsel %vm35, 1, 0
  %v37 = vcvt.s32.f32 %v36
  %38 = vadd.xlane.f32.xlu0 %v37
  %v39 = vpop.xlane.xlu0 %38
  %v41 = vlaneseq
  %v42 = vshrl.u32 %v41, 7
  %v43 = vsub.s32 0, %v42
  %v44 = vrot.slane %v27, %v43
  %v46 = vmul.f32 %v37, %v44
  %47 = vadd.xlane.f32.xlu0 %v46
  %v48 = vpop.xlane.xlu0 %47
  %v49 = vlaneseq
  %v50 = vshrl.u32 %v49, 7
  %v51 = vsub.s32 0, %v50
  %v52 = vrot.slane %v26, %v51
  %v53 = vmul.f32 %v37, %v52
  %54 = vadd.xlane.f32.xlu0 %v53
  %v55 = vpop.xlane.xlu0 %54
  %v56 = vlaneseq
  %v57 = vshrl.u32 %v56, 7
  %v58 = vsub.s32 1, %v57
  %v59 = vrot.slane %v26, %v58
  %v60 = vmul.f32 %v37, %v59
  %61 = vadd.xlane.f32.xlu0 %v60
  %v62 = vpop.xlane.xlu0 %61
  %v63 = vlaneseq
  %v64 = vshrl.u32 %v63, 7
  %v65 = vsub.s32 2, %v64
  %v66 = vrot.slane %v26, %v65
  %v67 = vmul.f32 %v37, %v66
  %68 = vadd.xlane.f32.xlu0 %v67
  %v69 = vpop.xlane.xlu0 %68
  %v70 = vlaneseq
  %v71 = vshrl.u32 %v70, 7
  %v72 = vsub.s32 3, %v71
  %v73 = vrot.slane %v26, %v72
  %v74 = vmul.f32 %v37, %v73
  %75 = vadd.xlane.f32.xlu0 %v74
  %v76 = vpop.xlane.xlu0 %75
  %v77 = vsub.f32 %v25, %v55
  %v78 = vand.u32 2147483647, %v77
  %v79 = vsub.f32 %v25, %v62
  %v80 = vand.u32 2147483647, %v79
  %82 = vrot.lane.b32.xlu0 %v80, 127
  %v83 = vpop.permute.xlu0 %82
  %v85 = vadd.f32 %v78, %v83
  %v86 = vsub.f32 %v25, %v69
  %v87 = vand.u32 2147483647, %v86
  %89 = vrot.lane.b32.xlu0 %v87, 126
  %v90 = vpop.permute.xlu0 %89
  %v92 = vadd.f32 %v85, %v90
  %v93 = vsub.f32 %v25, %v76
  %v94 = vand.u32 2147483647, %v93
  %96 = vrot.lane.b32.xlu0 %v94, 125
  %v97 = vpop.permute.xlu0 %96
  %v99 = vadd.f32 %v92, %v97
  %v100 = vmul.f32 %v99, %v39
  %vm101 = vcmask 7168
  %v102 = vsel %vm101, %v100, 0.0
  %v103 = vrot.slane %v102, 4
  %v104 = vadd.f32 %v102, %v103
  %v105 = vrot.slane %v104, 2
  %v106 = vadd.f32 %v104, %v105
  %v107 = vrot.slane %v106, 1
  %v108 = vadd.f32 %v106, %v107
  %v109 = vmul.f32 %v108, 0.33333334
  %111 = vrot.lane.b32.xlu0 %v25, 2
  %v112 = vpop.permute.xlu0 %111
  %v114 = vsub.f32 %v25, %v112
  %116 = vrot.lane.b32.xlu0 %v114, 127
  %v117 = vpop.permute.xlu0 %116
  %v119 = vmul.f32 %v114, %v117
  %v120 = vsub.f32 %v69, %v55
  %v121 = vsub.f32 %v76, %v62
  %v122 = vmul.f32 %v120, %v121
  %v123 = vmax.f32 %v25, %v55
  %v124 = vmax.f32 %v25, %v62
  %v125 = vmin.f32 %v25, %v69
  %v126 = vmin.f32 %v25, %v76
  %128 = vrot.lane.b32.xlu0 %v123, 2
  %v129 = vpop.permute.xlu0 %128
  %v131 = vsub.f32 %v125, %v129
  %v132 = vmax.f32 %v131, 0.0
  %134 = vrot.lane.b32.xlu0 %v124, 2
  %v135 = vpop.permute.xlu0 %134
  %v137 = vsub.f32 %v126, %v135
  %v138 = vmax.f32 %v137, 0.0
  %140 = vrot.lane.b32.xlu0 %v138, 127
  %v141 = vpop.permute.xlu0 %140
  %v143 = vmul.f32 %v132, %v141
  %v144 = vadd.f32 %v119, %v122
  %v145 = vsub.f32 %v144, %v143
  %v146 = vmax.f32 %v145, 1e-09
  %v147 = vrcp.pop %v146
  %v148 = vmul.f32 %v143, %v147
  %v149 = vmin.f32 %v25, %v55
  %v150 = vmin.f32 %v25, %v62
  %v151 = vmax.f32 %v25, %v69
  %v152 = vmax.f32 %v25, %v76
  %154 = vrot.lane.b32.xlu0 %v149, 2
  %v155 = vpop.permute.xlu0 %154
  %v157 = vsub.f32 %v151, %v155
  %v158 = vmax.f32 %v157, 0.0
  %160 = vrot.lane.b32.xlu0 %v150, 2
  %v161 = vpop.permute.xlu0 %160
  %v163 = vsub.f32 %v152, %v161
  %v164 = vmax.f32 %v163, 0.0
  %166 = vrot.lane.b32.xlu0 %v164, 127
  %v167 = vpop.permute.xlu0 %166
  %v169 = vmul.f32 %v158, %v167
  %v170 = vsub.f32 %v169, %v145
  %v171 = vmax.f32 %v169, 1e-09
  %v172 = vrcp.pop %v171
  %v173 = vmul.f32 %v170, %v172
  %v174 = vsub.f32 %v148, %v173
  %v175 = vsub.f32 1.0, %v174
  %v176 = vmul.f32 %v175, %v39
  %vm177 = vcmask 23568
  %v178 = vsel %vm177, %v176, 0.0
  %v179 = vrot.slane %v178, 4
  %v180 = vadd.f32 %v178, %v179
  %v181 = vrot.slane %v180, 2
  %v182 = vadd.f32 %v180, %v181
  %v183 = vrot.slane %v182, 1
  %v184 = vadd.f32 %v182, %v183
  %v185 = vmul.f32 %v184, 0.33333334
  %v186 = vsub.f32 1.0, %v23
  %v187 = vlog2.pop %v186
  %v188 = vmul.f32 %v187, 0.6931472
  %v189 = vmax.f32 %v188, -100.0
  %v190 = vsub.f32 0.0, %v24
  %v192 = vlaneseq
  %v193 = vshrl.u32 %v192, 7
  %v194 = vsub.s32 0, %v193
  %v195 = vrot.slane %v190, %v194
  %v197 = vmul.f32 %v195, %v189
  %v198 = vsub.f32 0.0, %v197
  %v199 = vmul.f32 %v198, 1.442695
  %v200 = vpow.pop %v199
  %v201 = vsub.f32 1.0, %v200
  %v202 = vmul.f32 %v201, %v201
  %v203 = vmul.f32 %v202, %v197
  %vm204 = vcmask 130048
  %v205 = vsel %vm204, %v203, 0.0
  %206 = vadd.xlane.f32.xlu0 %v205
  %v207 = vpop.xlane.xlu0 %206
  %v208 = vsub.f32 1.0, %v39
  %v209 = vmul.f32 %v207, %v208
  %v210 = vrot.slane %v209, 4
  %v211 = vadd.f32 %v209, %v210
  %v212 = vrot.slane %v211, 2
  %v213 = vadd.f32 %v211, %v212
  %v214 = vrot.slane %v213, 1
  %v215 = vadd.f32 %v213, %v214
  %v216 = vmul.f32 %v215, 0.0625
  %v217 = vlaneseq
  %v218 = vand.u32 %v217, 127
  %v219 = vcvt.s32.f32 %v218
  %vm220 = vcmp.eq.f32.partialorder %v219, %v48
  %v221 = vsel %vm220, 1, 0
  %v222 = vcvt.s32.f32 %v221
  %v223 = vmul.f32 %v222, %v39
  %v224 = vmul.f32 %v223, %v23
  %v225 = vsel %vm204, %v224, 0.0
  %226 = vadd.xlane.f32.xlu0 %v225
  %v227 = vpop.xlane.xlu0 %226
  %v229 = vlaneseq
  %v230 = vshrl.u32 %v229, 7
  %v231 = vsub.s32 0, %v230
  %v232 = vrot.slane %v24, %v231
  %v234 = vmul.f32 %v223, %v232
  %v235 = vsel %vm204, %v234, 0.0
  %236 = vadd.xlane.f32.xlu0 %v235
  %v237 = vpop.xlane.xlu0 %236
  %v238 = vmul.f32 %v223, %v203
  %v239 = vsel %vm204, %v238, 0.0
  %240 = vadd.xlane.f32.xlu0 %v239
  %v241 = vpop.xlane.xlu0 %240
  %v242 = vlog2.pop %v227
  %v243 = vmul.f32 %v242, 0.6931472
  %v244 = vmax.f32 %v243, -100.0
  %v245 = vsub.f32 0.0, %v237
  %v246 = vmul.f32 %v245, %v244
  %v247 = vsub.f32 0.0, %v246
  %v248 = vmul.f32 %v247, 1.442695
  %v249 = vpow.pop %v248
  %v250 = vsub.f32 1.0, %v249
  %v251 = vmul.f32 %v250, %v250
  %v252 = vmul.f32 %v251, %v246
  %v253 = vmul.f32 %v252, 10.0
  %v254 = vsub.f32 %v207, %v241
  %v255 = vadd.f32 %v254, %v253
  %v256 = vmul.f32 %v255, %v39
  %v257 = vrot.slane %v256, 4
  %v258 = vadd.f32 %v256, %v257
  %v259 = vrot.slane %v258, 2
  %v260 = vadd.f32 %v258, %v259
  %v261 = vrot.slane %v260, 1
  %v262 = vadd.f32 %v260, %v261
  %v263 = vmul.f32 %v262, 0.33333334
  %vm264 = vcmp.eq.s32.totalorder %v218, 0
  %vm265 = vcmp.eq.s32.totalorder %v218, 1
  %vm266 = vcmp.eq.s32.totalorder %v218, 2
  %vm267 = vcmp.eq.s32.totalorder %v218, 3
  %269 = vset.pattern.permute.xlu0 2
  %270 = vperm.xlu0 %269, %v185
  %v271 = vpop.permute.xlu0 %270
  %v273 = vsel %vm267, %v271, 0.0
  %275 = vset.pattern.permute.xlu0 0
  %276 = vperm.xlu0 %275, %v109
  %v277 = vpop.permute.xlu0 %276
  %v279 = vsel %vm266, %v277, %v273
  %v280 = vsel %vm265, %v216, %v279
  %v281 = vsel %vm264, %v263, %v280
  %282 = vst [vmem:[%s6] sm:$0x1] %v281
  // Predicated region
  $region26: #{_push_pull_loss_jit.3} parent=0 // pred_check
    _
  $region27: #{_push_pull_loss_jit.3} parent=0 // pred_check_branch
    %284 = sbr.rel (0) target = $region29
  $region28: #{_push_pull_loss_jit.3} parent=0 // pred_region
    _
  $region29: #{_push_pull_loss_jit.3} parent=0 // pred_fallthru
    _
  // Predicated region
  $region30: #{_push_pull_loss_jit.3} parent=0 // pred_check
    _
  $region31: #{_push_pull_loss_jit.3} parent=0 // pred_check_branch
    %286 = sbr.rel (0) target = $region33
  $region32: #{_push_pull_loss_jit.3} parent=0 // pred_region
    _
  $region33: #{_push_pull_loss_jit.3} parent=0 // pred_fallthru
    _

</llo_original>
